<compile_context>
chip_gen: v7x
topology: tpu7x:2x2x1
jax: 0.10.0
libtpu: 0.0.40
codegen_flags: <defaults>
</compile_context>

<pallas_src>
import functools

import numpy as np

import jax
import jax.numpy as jnp
from jax import lax
from jax.experimental import pallas as pl
from jax.experimental.pallas import tpu as pltpu


# --------------------------------------------------------------------------- #
# Host-side construction of the banded FIR + decimation matrices (cached).
# --------------------------------------------------------------------------- #
def _fir_matrix(k1d, in_size, factor, pad0, pad1):
    """Banded matrix A (out, in) s.t. y = A @ x == pad -> correlate(flip(k)) -> stride.

    Zero padding is folded in (taps landing in the pad region contribute 0), so
    the kernel consumes the *unpadded* input.
    """
    k1d = np.asarray(k1d, dtype=np.float64)
    k = k1d.shape[0]
    out_size = (in_size + pad0 + pad1 - k) // factor + 1
    taps = k1d[::-1] / k1d.sum()  # flipped + normalized 1-D taps (separable)
    a = np.zeros((out_size, in_size), dtype=np.float64)
    for o in range(out_size):
        for i in range(k):
            src = o * factor + i - pad0
            if 0 <= src < in_size:
                a[o, src] += taps[i]
    return a.astype(np.float32)


@functools.lru_cache(maxsize=None)
def _fir_matrices_np(k_tuple, H, W, factor, pad0, pad1):
    A = _fir_matrix(k_tuple, H, factor, pad0, pad1)     # (H_out, H)
    Bm = _fir_matrix(k_tuple, W, factor, pad0, pad1)    # (W_out, W)
    Bt = np.ascontiguousarray(Bm.T)                     # (W, W_out) -- transpose hoisted
    return A, Bt


@functools.lru_cache(maxsize=None)
def _fir_matrices_dev(k_tuple, H, W, factor, pad0, pad1, dtype_name):
    """Device-resident FIR matrices, cached so they are not re-uploaded per call."""
    A, Bt = _fir_matrices_np(k_tuple, H, W, factor, pad0, pad1)
    dt = jnp.dtype(dtype_name)
    return jnp.asarray(A, dtype=dt), jnp.asarray(Bt, dtype=dt)


# --------------------------------------------------------------------------- #
# Pallas kernel body.
# --------------------------------------------------------------------------- #
def _downsample_body(x_ref, a_ref, bt_ref, o_ref, xw_ref):
    # x_ref : (t_n, H, W)        feature planes (batch*channel tiled)
    # a_ref : (H_out, H)         row-direction FIR+downsample matrix
    # bt_ref: (W, W_out)         col-direction FIR+downsample matrix, pre-transposed
    # o_ref : (t_n, H_out, W_out)
    # xw_ref: (t_n, H, W_out)    VMEM scratch for the W-filtered intermediate
    t_n, H, W = x_ref.shape
    W_out = bt_ref.shape[1]

    # (1) W-direction FIR + decimation, fused across ALL planes of this block:
    #     one (t_n*H, W) @ (W, W_out) matmul keeps the MXU full instead of t_n
    #     tiny per-plane matmuls.  The (t_n, H) merge is a free leading-dim reshape.
    xw = jnp.dot(x_ref[...].reshape(t_n * H, W), bt_ref[...],
                 preferred_element_type=jnp.float32)
    xw_ref[...] = xw.reshape(t_n, H, W_out).astype(xw_ref.dtype)

    # (2) H-direction FIR + decimation per plane, streamed from VMEM scratch so
    #     per-iteration live vreg state stays small (t_n is capped by the wrapper).
    for i in range(t_n):
        y = jnp.dot(a_ref[...], xw_ref[i], preferred_element_type=jnp.float32)
        o_ref[i] = y.astype(o_ref.dtype)


# --------------------------------------------------------------------------- #
# Wrapper: Downsample.forward == upfirdn2d(x, make_kernel(k), up=1, down=factor).
# --------------------------------------------------------------------------- #
def downsample_forward(x, blur_kernel, factor=2):
    B, C, H, W = x.shape
    k1 = np.asarray(blur_kernel, dtype=np.float32)
    if k1.ndim != 1:
        # TODO(synk): non-separable 2-D blur kernels (make_kernel with a 2-D arg)
        # are not expressible as the two-matmul separable form used here.
        raise NotImplementedError("only 1-D (separable) blur kernels are supported")
    k = int(k1.shape[0])
    p = k - factor
    pad0, pad1 = (p + 1) // 2, p // 2
    if pad0 < 0 or pad1 < 0:
        raise NotImplementedError("negative padding (kernel smaller than factor)")
    H_out = (H + pad0 + pad1 - k) // factor + 1
    W_out = (W + pad0 + pad1 - k) // factor + 1
    if H_out <= 0 or W_out <= 0:
        raise ValueError("input spatially too small for this kernel/factor")

    # bf16 inputs -> bf16 FIR matrices / intermediate (full-rate MXU), f32 accumulation.
    is_bf16 = x.dtype == jnp.bfloat16
    mat_dtype = jnp.bfloat16 if is_bf16 else jnp.float32
    interm_dtype = jnp.bfloat16 if is_bf16 else jnp.float32
    A_dev, Bt_dev = _fir_matrices_dev(
        tuple(float(v) for v in k1), H, W, factor, pad0, pad1,
        jnp.dtype(mat_dtype).name)

    N = B * C
    x_flat = x.reshape(N, H, W)

    # ---- block sizing with real per-step VMEM accounting ---------------------
    itemsize = x.dtype.itemsize
    mat_itemsize = jnp.dtype(mat_dtype).itemsize
    interm_itemsize = jnp.dtype(interm_dtype).itemsize
    plane_in = H * W * itemsize
    plane_out = H_out * W_out * itemsize
    mats_bytes = (H_out * H + W * W_out) * mat_itemsize

    def vmem_est(t):
        return (2 * t * plane_in                     # double-buffered input block
                + 2 * t * plane_out                  # double-buffered output block
                + 2 * mats_bytes                     # A + Bt (double-buffered)
                + 2 * t * H * W_out * interm_itemsize)  # scratch + matmul result

    TARGET_IN = 4 << 20      # ~2-4 MiB of input per grid step (HBM roofline sweet spot)
    VMEM_BUDGET = 40 << 20   # headroom under v7x's 64 MiB physical VMEM
    MAX_UNROLL = 32          # bound the static H-direction unroll / code size

    divisors = [t for t in range(1, N + 1) if N % t == 0]
    t_n = 1
    for t in divisors:
        if (t <= MAX_UNROLL and t * plane_in <= TARGET_IN
                and vmem_est(t) <= VMEM_BUDGET):
            t_n = t
    # Keep >= 2 grid steps when possible so the pipeline overlaps DMA with compute.
    if t_n == N and N > 1:
        for t in reversed(divisors):
            if t < N:
                t_n = t
                break
    # Prefer an even number of grid steps for small grids (v7x: 2 TensorCores
    # share the "parallel" axis; avoids one core idling on an odd tail).
    steps = N // t_n
    if 1 < steps < 8 and steps % 2 == 1 and t_n % 2 == 0:
        t_n //= 2
    steps = N // t_n
    # TODO(synk): a single plane larger than the block budget (very large H*W)
    # falls back to t_n=1 without H-tiling; banded per-H-tile A slices would be
    # needed to bound per-step VMEM there (mainly a v7x concern).

    vmem_limit = int(min(max(int(vmem_est(t_n) * 1.25) + (2 << 20), 16 << 20),
                         110 << 20))

    flops = 2 * N * (H * W * W_out + H_out * H * W_out)
    bytes_accessed = N * (plane_in + plane_out) + mats_bytes

    out_flat = pl.pallas_call(
        _downsample_body,
        out_shape=jax.ShapeDtypeStruct((N, H_out, W_out), x.dtype),
        grid_spec=pltpu.PrefetchScalarGridSpec(
            num_scalar_prefetch=0,
            grid=(steps,),
            in_specs=[
                pl.BlockSpec((t_n, H, W), lambda n: (n, 0, 0)),      # feature planes
                pl.BlockSpec((H_out, H), lambda n: (0, 0)),          # row FIR matrix
                pl.BlockSpec((W, W_out), lambda n: (0, 0)),          # col FIR matrix (pre-T)
            ],
            out_specs=pl.BlockSpec((t_n, H_out, W_out), lambda n: (n, 0, 0)),
            scratch_shapes=[pltpu.VMEM((t_n, H, W_out), interm_dtype)],
        ),
        compiler_params=pltpu.CompilerParams(
            dimension_semantics=("parallel",),
            vmem_limit_bytes=vmem_limit,
        ),
        cost_estimate=pl.CostEstimate(
            flops=int(flops), transcendentals=0, bytes_accessed=int(bytes_accessed)),
    )(x_flat, A_dev, Bt_dev)

    return out_flat.reshape(B, C, H_out, W_out)


# --------------------------------------------------------------------------- #
# Pure-JAX reference (matches upfirdn2d_native: pad -> conv with flipped kernel -> ::down).
# --------------------------------------------------------------------------- #
def reference_downsample(x, blur_kernel, factor=2):
    k1 = jnp.asarray(blur_kernel, jnp.float32)
    k2 = jnp.outer(k1, k1)
    k2 = k2 / jnp.sum(k2)
    kh = k2.shape[0]
    p = kh - factor
    pad0, pad1 = (p + 1) // 2, p // 2
    C = x.shape[1]
    w = jnp.tile(jnp.flip(k2)[None, None], (C, 1, 1, 1))   # depthwise, flipped = true conv
    return lax.conv_general_dilated(
        x.astype(jnp.float32), w, window_strides=(factor, factor),
        padding=((pad0, pad1), (pad0, pad1)),
        dimension_numbers=("NCHW", "OIHW", "NCHW"),
        feature_group_count=C)


if __name__ == "__main__":
    key = jax.random.PRNGKey(0)
    B, C, H, W = 2, 4, 16, 16
    factor = 2
    x = jax.random.normal(key, (B, C, H, W), jnp.float32)

    # symmetric (the module's usual [1,3,3,1]) and an asymmetric kernel (exercises the flip)
    for blur in ([1.0, 3.0, 3.0, 1.0], [1.0, 2.0, 3.0, 4.0]):
        out = downsample_forward(x, blur, factor)
        out = jax.block_until_ready(out)
        ref = reference_downsample(x, blur, factor)
        assert out.shape == (B, C, H // factor, W // factor)
        assert jnp.allclose(out, ref, atol=1e-5, rtol=1e-5), "mismatch vs reference"

    # bf16 smoke test (exercises the bf16 FIR-matrix / intermediate path)
    out_bf16 = downsample_forward(x.astype(jnp.bfloat16), [1.0, 3.0, 3.0, 1.0], factor)
    out_bf16 = jax.block_until_ready(out_bf16)
    assert out_bf16.shape == (B, C, H // factor, W // factor)
    assert bool(jnp.all(jnp.isfinite(out_bf16.astype(jnp.float32))))

    print("KERNEL_OK")
</pallas_src>

<mosaic_0001>
module attributes {stable_mosaic.version = 11 : i64} {
  func.func @_downsample_body(%arg0: i32, %arg1: memref<4x16x16xf32, #tpu.memory_space<vmem>>, %arg2: memref<8x16xf32, #tpu.memory_space<vmem>>, %arg3: memref<16x8xf32, #tpu.memory_space<vmem>>, %arg4: memref<4x8x8xf32, #tpu.memory_space<vmem>>, %arg5: memref<4x16x8xf32, #tpu.memory_space<vmem>>) attributes {dimension_semantics = [#tpu.dimension_semantics<parallel>], iteration_bounds = array<i64: 2>, scalar_prefetch = 0 : i64, scratch_operands = 1 : i64, tpu.core_type = #tpu.core_type<tc>, window_params = [{transform_indices = @transform_0, window_bounds = array<i64: 4, 16, 16>}, {pipeline_mode = #tpu.pipeline_mode<synchronous>, transform_indices = @transform_1, window_bounds = array<i64: 8, 16>}, {pipeline_mode = #tpu.pipeline_mode<synchronous>, transform_indices = @transform_2, window_bounds = array<i64: 16, 8>}, {transform_indices = @transform_3, window_bounds = array<i64: 4, 8, 8>}]} {
    %c0 = arith.constant 0 : index
    %c0_0 = arith.constant 0 : index
    %c0_1 = arith.constant 0 : index
    %0 = vector.load %arg1[%c0, %c0_0, %c0_1] : memref<4x16x16xf32, #tpu.memory_space<vmem>>, vector<4x16x16xf32>
    %1 = vector.shape_cast %0 : vector<4x16x16xf32> to vector<64x16xf32>
    %c0_2 = arith.constant 0 : index
    %c0_3 = arith.constant 0 : index
    %2 = vector.load %arg3[%c0_2, %c0_3] : memref<16x8xf32, #tpu.memory_space<vmem>>, vector<16x8xf32>
    %cst = arith.constant dense<0.000000e+00> : vector<64x8xf32>
    %3 = tpu.matmul %1, %2, %cst {dimension_numbers = #tpu.dot_dimension_numbers<[1], [0], [0], [1], [0, 0, 1, 1], [], []>} : vector<64x16xf32>, vector<16x8xf32>, vector<64x8xf32> -> vector<64x8xf32>
    %4 = vector.shape_cast %3 : vector<64x8xf32> to vector<4x16x8xf32>
    %c0_4 = arith.constant 0 : index
    %c0_5 = arith.constant 0 : index
    %c0_6 = arith.constant 0 : index
    %5 = vector.load %arg5[%c0_4, %c0_5, %c0_6] : memref<4x16x8xf32, #tpu.memory_space<vmem>>, vector<4x16x8xf32>
    tpu.vector_store %arg5[%c0_4, %c0_5, %c0_6], %4 {strides = array<i32>} : memref<4x16x8xf32, #tpu.memory_space<vmem>>, vector<4x16x8xf32>,
    %c0_7 = arith.constant 0 : index
    %c0_8 = arith.constant 0 : index
    %6 = vector.load %arg2[%c0_7, %c0_8] : memref<8x16xf32, #tpu.memory_space<vmem>>, vector<8x16xf32>
    %c0_9 = arith.constant 0 : index
    %c0_10 = arith.constant 0 : index
    %c0_11 = arith.constant 0 : index
    %7 = vector.load %arg5[%c0_9, %c0_10, %c0_11] : memref<4x16x8xf32, #tpu.memory_space<vmem>>, vector<1x16x8xf32>
    %8 = vector.shape_cast %7 : vector<1x16x8xf32> to vector<16x8xf32>
    %cst_12 = arith.constant dense<0.000000e+00> : vector<8x8xf32>
    %9 = tpu.matmul %6, %8, %cst_12 {dimension_numbers = #tpu.dot_dimension_numbers<[1], [0], [0], [1], [0, 0, 1, 1], [], []>} : vector<8x16xf32>, vector<16x8xf32>, vector<8x8xf32> -> vector<8x8xf32>
    %c0_13 = arith.constant 0 : index
    %c0_14 = arith.constant 0 : index
    %c0_15 = arith.constant 0 : index
    %10 = vector.load %arg4[%c0_13, %c0_14, %c0_15] : memref<4x8x8xf32, #tpu.memory_space<vmem>>, vector<1x8x8xf32>
    %11 = vector.shape_cast %10 : vector<1x8x8xf32> to vector<8x8xf32>
    %12 = vector.shape_cast %9 : vector<8x8xf32> to vector<1x8x8xf32>
    tpu.vector_store %arg4[%c0_13, %c0_14, %c0_15], %12 {strides = array<i32>} : memref<4x8x8xf32, #tpu.memory_space<vmem>>, vector<1x8x8xf32>,
    %c0_16 = arith.constant 0 : index
    %c0_17 = arith.constant 0 : index
    %13 = vector.load %arg2[%c0_16, %c0_17] : memref<8x16xf32, #tpu.memory_space<vmem>>, vector<8x16xf32>
    %c1 = arith.constant 1 : index
    %c0_18 = arith.constant 0 : index
    %c0_19 = arith.constant 0 : index
    %14 = vector.load %arg5[%c1, %c0_18, %c0_19] : memref<4x16x8xf32, #tpu.memory_space<vmem>>, vector<1x16x8xf32>
    %15 = vector.shape_cast %14 : vector<1x16x8xf32> to vector<16x8xf32>
    %cst_20 = arith.constant dense<0.000000e+00> : vector<8x8xf32>
    %16 = tpu.matmul %13, %15, %cst_20 {dimension_numbers = #tpu.dot_dimension_numbers<[1], [0], [0], [1], [0, 0, 1, 1], [], []>} : vector<8x16xf32>, vector<16x8xf32>, vector<8x8xf32> -> vector<8x8xf32>
    %c1_21 = arith.constant 1 : index
    %c0_22 = arith.constant 0 : index
    %c0_23 = arith.constant 0 : index
    %17 = vector.load %arg4[%c1_21, %c0_22, %c0_23] : memref<4x8x8xf32, #tpu.memory_space<vmem>>, vector<1x8x8xf32>
    %18 = vector.shape_cast %17 : vector<1x8x8xf32> to vector<8x8xf32>
    %19 = vector.shape_cast %16 : vector<8x8xf32> to vector<1x8x8xf32>
    tpu.vector_store %arg4[%c1_21, %c0_22, %c0_23], %19 {strides = array<i32>} : memref<4x8x8xf32, #tpu.memory_space<vmem>>, vector<1x8x8xf32>,
    %c0_24 = arith.constant 0 : index
    %c0_25 = arith.constant 0 : index
    %20 = vector.load %arg2[%c0_24, %c0_25] : memref<8x16xf32, #tpu.memory_space<vmem>>, vector<8x16xf32>
    %c2 = arith.constant 2 : index
    %c0_26 = arith.constant 0 : index
    %c0_27 = arith.constant 0 : index
    %21 = vector.load %arg5[%c2, %c0_26, %c0_27] : memref<4x16x8xf32, #tpu.memory_space<vmem>>, vector<1x16x8xf32>
    %22 = vector.shape_cast %21 : vector<1x16x8xf32> to vector<16x8xf32>
    %cst_28 = arith.constant dense<0.000000e+00> : vector<8x8xf32>
    %23 = tpu.matmul %20, %22, %cst_28 {dimension_numbers = #tpu.dot_dimension_numbers<[1], [0], [0], [1], [0, 0, 1, 1], [], []>} : vector<8x16xf32>, vector<16x8xf32>, vector<8x8xf32> -> vector<8x8xf32>
    %c2_29 = arith.constant 2 : index
    %c0_30 = arith.constant 0 : index
    %c0_31 = arith.constant 0 : index
    %24 = vector.load %arg4[%c2_29, %c0_30, %c0_31] : memref<4x8x8xf32, #tpu.memory_space<vmem>>, vector<1x8x8xf32>
    %25 = vector.shape_cast %24 : vector<1x8x8xf32> to vector<8x8xf32>
    %26 = vector.shape_cast %23 : vector<8x8xf32> to vector<1x8x8xf32>
    tpu.vector_store %arg4[%c2_29, %c0_30, %c0_31], %26 {strides = array<i32>} : memref<4x8x8xf32, #tpu.memory_space<vmem>>, vector<1x8x8xf32>,
    %c0_32 = arith.constant 0 : index
    %c0_33 = arith.constant 0 : index
    %27 = vector.load %arg2[%c0_32, %c0_33] : memref<8x16xf32, #tpu.memory_space<vmem>>, vector<8x16xf32>
    %c3 = arith.constant 3 : index
    %c0_34 = arith.constant 0 : index
    %c0_35 = arith.constant 0 : index
    %28 = vector.load %arg5[%c3, %c0_34, %c0_35] : memref<4x16x8xf32, #tpu.memory_space<vmem>>, vector<1x16x8xf32>
    %29 = vector.shape_cast %28 : vector<1x16x8xf32> to vector<16x8xf32>
    %cst_36 = arith.constant dense<0.000000e+00> : vector<8x8xf32>
    %30 = tpu.matmul %27, %29, %cst_36 {dimension_numbers = #tpu.dot_dimension_numbers<[1], [0], [0], [1], [0, 0, 1, 1], [], []>} : vector<8x16xf32>, vector<16x8xf32>, vector<8x8xf32> -> vector<8x8xf32>
    %c3_37 = arith.constant 3 : index
    %c0_38 = arith.constant 0 : index
    %c0_39 = arith.constant 0 : index
    %31 = vector.load %arg4[%c3_37, %c0_38, %c0_39] : memref<4x8x8xf32, #tpu.memory_space<vmem>>, vector<1x8x8xf32>
    %32 = vector.shape_cast %31 : vector<1x8x8xf32> to vector<8x8xf32>
    %33 = vector.shape_cast %30 : vector<8x8xf32> to vector<1x8x8xf32>
    tpu.vector_store %arg4[%c3_37, %c0_38, %c0_39], %33 {strides = array<i32>} : memref<4x8x8xf32, #tpu.memory_space<vmem>>, vector<1x8x8xf32>,
    return
  }
  func.func @transform_0(%arg0: i32) -> (i32, i32, i32) {
    %c0_i32 = arith.constant 0 : i32
    %c0_i32_0 = arith.constant 0 : i32
    %c0_i32_1 = arith.constant 0 : i32
    return %arg0, %c0_i32, %c0_i32_0 : i32, i32, i32
  }
  func.func @transform_1(%arg0: i32) -> (i32, i32) {
    %c0_i32 = arith.constant 0 : i32
    %c0_i32_0 = arith.constant 0 : i32
    %c0_i32_1 = arith.constant 0 : i32
    return %c0_i32, %c0_i32_0 : i32, i32
  }
  func.func @transform_2(%arg0: i32) -> (i32, i32) {
    %c0_i32 = arith.constant 0 : i32
    %c0_i32_0 = arith.constant 0 : i32
    %c0_i32_1 = arith.constant 0 : i32
    return %c0_i32, %c0_i32_0 : i32, i32
  }
  func.func @transform_3(%arg0: i32) -> (i32, i32, i32) {
    %c0_i32 = arith.constant 0 : i32
    %c0_i32_0 = arith.constant 0 : i32
    %c0_i32_1 = arith.constant 0 : i32
    return %arg0, %c0_i32, %c0_i32_0 : i32, i32, i32
  }
}

</mosaic_0001>

<llo_original>
// kernel: tpu_custom_call.1
$region0: #{tpu_custom_call.1}
  #allocation0 [shape = 'u32[]', space=smem, size = 0x4, offset = 0x4, fixed_abs, tag = 'smem constant byte address 0x4 - core index']
  #allocation1 [shape = 'u32[144,128]{1,0:T(1,128)}', space=vmem, size = 0x12000, scoped, tag = 'internal scratch']
  #allocation2 [shape = 'f32[4,16,8]{2,1,0:T(8,128)}', space=vmem, size = 0x8000, scoped, tag = 'scratch operand']
  %s0 = inlined_call_operand.hbm [shape: f32[8,16,16], index: 0, kind: input, shape index: {}]
  %s1 = inlined_call_operand.vmem [shape: f32[8,16], index: 1, kind: input, shape index: {}]
  %s2 = inlined_call_operand.vmem [shape: f32[16,8], index: 2, kind: input, shape index: {}]
  %s3 = inlined_call_operand.hbm [shape: f32[8,8,8], index: 3, kind: output, shape index: {}]
  %s4 = sld [smem:[#allocation0]]
  $region49: #{tpu_custom_call.1} parent=0
    _
  %s6 = ssub.s32 1, %s4
  %s7 = scalar_select 0, %s6, %s4
  $region1: #{tpu_custom_call.1} parent=0
    #allocation3 [shape = 'u8[65536]{0}', space=vmem, size = 0x10000, scoped, tag = 'input window, operand 0']
    #allocation4 [shape = 's32[2]{0}', space=sflag, size = 0x8, scoped, tag = 'scoped memory for tpu_custom_call.1']
    #allocation5 [shape = 's32[2]{0}', space=sflag, size = 0x8, scoped, tag = 'scoped memory for tpu_custom_call.1']
    #allocation6 [shape = 'u8[32768]{0}', space=vmem, size = 0x8000, scoped, tag = 'output window, operand 0']
    %8 = vsyncpa [#allocation4], 0
    %s9 = scalar_lea.sflag [#allocation4], 1
    %10 = vsyncpa %s9, 0
    %11 = vsyncpa [#allocation5], 0
    %s12 = scalar_lea.sflag [#allocation5], 1
    %13 = vsyncpa %s12, 0
    loop: start=0, step=1, limit=4
    $region2: #{tpu_custom_call.1} parent=1 // loop_pre_header
      _
    $region3: #{tpu_custom_call.1} parent=1 // loop_header
      %s15 = sphi 0, %s19
      %p16 = scmp.ge.s32.totalorder %s15, 4
      %s25 = sphi 0, %s27
      %s28 = sphi 0, %s25
      %s29 = sphi 0, %s28
      %s45 = sphi 0, %s29
      %s49 = sphi 0, %s49
      %s51 = sphi 0, %s49
      %s52 = sphi 0, %s51
      %s66 = sphi 0, %s52
      %s70 = sphi 0, %s70
      %s72 = sphi 0, %s70
      %s73 = sphi 0, %s72
      %s87 = sphi 0, %s73
      %s93 = sphi 0, %s95
      %s96 = sphi 0, %s93
      %s97 = sphi 0, %s96
      %s113 = sphi 0, %s97
    $region4: #{tpu_custom_call.1} parent=1 // loop_header_branch
      %18 = sbr.rel (%p16) target = $region8
    $region5: #{tpu_custom_call.1} parent=1 // loop_body
      %s20 = ssub.s32 %s15, 1
      %s21 = ssub.s32 %s15, 2
      %s22 = sadd.s32 %s15, 1
      %s23 = ssub.s32 %s15, %s22
      %p24 = scmp.eq.s32.totalorder %s23, 0
      %s26 = sadd.s32 %s25, 1
      %s27 = scalar_select %p24, %s25, %s26
      %p30 = pneg %p24
      %p31 = scmp.eq.s32.totalorder %s15, 1
      %p32 = por %p30, %p31
      %p33 = scmp.ne.s32.totalorder %s25, %s28
      %p34 = scmp.eq.s32.totalorder %s15, 0
      %p35 = por %p33, %p34
      %p36 = scmp.ne.s32.totalorder %s25, %s28
      %p37 = scmp.eq.s32.totalorder %s20, 1
      %p38 = por %p36, %p37
      %p39 = scmp.ne.s32.totalorder %s28, %s29
      %p40 = scmp.eq.s32.totalorder %s20, 0
      %p41 = por %p39, %p40
      %p42 = scmp.ne.s32.totalorder %s28, %s29
      %p43 = scmp.eq.s32.totalorder %s21, 1
      %p44 = por %p42, %p43
      %p46 = scmp.ne.s32.totalorder %s29, %s45
      %p47 = scmp.eq.s32.totalorder %s21, 0
      %p48 = por %p46, %p47
      %s50 = sadd.s32 %s49, 1
      %p53 = scmp.eq.s32.totalorder %s15, 1
      %p54 = scmp.ne.s32.totalorder %s49, %s51
      %p55 = scmp.eq.s32.totalorder %s15, 0
      %p56 = por %p54, %p55
      %p57 = scmp.ne.s32.totalorder %s49, %s51
      %p58 = scmp.eq.s32.totalorder %s20, 1
      %p59 = por %p57, %p58
      %p60 = scmp.ne.s32.totalorder %s51, %s52
      %p61 = scmp.eq.s32.totalorder %s20, 0
      %p62 = por %p60, %p61
      %p63 = scmp.ne.s32.totalorder %s51, %s52
      %p64 = scmp.eq.s32.totalorder %s21, 1
      %p65 = por %p63, %p64
      %p67 = scmp.ne.s32.totalorder %s52, %s66
      %p68 = scmp.eq.s32.totalorder %s21, 0
      %p69 = por %p67, %p68
      %s71 = sadd.s32 %s70, 1
      %p74 = scmp.eq.s32.totalorder %s15, 1
      %p75 = scmp.ne.s32.totalorder %s70, %s72
      %p76 = scmp.eq.s32.totalorder %s15, 0
      %p77 = por %p75, %p76
      %p78 = scmp.ne.s32.totalorder %s70, %s72
      %p79 = scmp.eq.s32.totalorder %s20, 1
      %p80 = por %p78, %p79
      %p81 = scmp.ne.s32.totalorder %s72, %s73
      %p82 = scmp.eq.s32.totalorder %s20, 0
      %p83 = por %p81, %p82
      %p84 = scmp.ne.s32.totalorder %s72, %s73
      %p85 = scmp.eq.s32.totalorder %s21, 1
      %p86 = por %p84, %p85
      %p88 = scmp.ne.s32.totalorder %s73, %s87
      %p89 = scmp.eq.s32.totalorder %s21, 0
      %p90 = por %p88, %p89
      %s91 = ssub.s32 %s15, %s22
      %p92 = scmp.eq.s32.totalorder %s91, 0
      %s94 = sadd.s32 %s93, 1
      %s95 = scalar_select %p92, %s93, %s94
      %p98 = pneg %p92
      %p99 = scmp.eq.s32.totalorder %s15, 1
      %p100 = por %p98, %p99
      %p101 = scmp.ne.s32.totalorder %s93, %s96
      %p102 = scmp.eq.s32.totalorder %s15, 0
      %p103 = por %p101, %p102
      %p104 = scmp.ne.s32.totalorder %s93, %s96
      %p105 = scmp.eq.s32.totalorder %s20, 1
      %p106 = por %p104, %p105
      %p107 = scmp.ne.s32.totalorder %s96, %s97
      %p108 = scmp.eq.s32.totalorder %s20, 0
      %p109 = por %p107, %p108
      %p110 = scmp.ne.s32.totalorder %s96, %s97
      %p111 = scmp.eq.s32.totalorder %s21, 1
      %p112 = por %p110, %p111
      %p114 = scmp.ne.s32.totalorder %s97, %s113
      %p115 = scmp.eq.s32.totalorder %s21, 0
      %p116 = por %p114, %p115
      %p117 = scmp.le.s32.totalorder 1, %s15
      %p118 = scmp.lt.s32.totalorder %s15, 3
      %p119 = pnand %p117, %p118
      %p120 = pneg %p119
      // Predicated region
      $region9: #{tpu_custom_call.1} parent=5 // pred_check
        _
      $region10: #{tpu_custom_call.1} parent=5 // pred_check_branch
        %122 = sbr.rel (%p119) target = $region12
      $region11: #{tpu_custom_call.1} parent=5 // pred_region
        %s123 = ssub.s32 %s15, 1
        // Predicated region
        $region13: #{tpu_custom_call.1} parent=11 // pred_check
          %p124 = pneg %p62
        $region14: #{tpu_custom_call.1} parent=11 // pred_check_branch
          %126 = sbr.rel (%p124) target = $region16
        $region15: #{tpu_custom_call.1} parent=11 // pred_region
          _
        $region16: #{tpu_custom_call.1} parent=11 // pred_fallthru
          _
        // Predicated region
        $region17: #{tpu_custom_call.1} parent=11 // pred_check
          %p127 = pneg %p83
        $region18: #{tpu_custom_call.1} parent=11 // pred_check_branch
          %129 = sbr.rel (%p127) target = $region20
        $region19: #{tpu_custom_call.1} parent=11 // pred_region
          _
        $region20: #{tpu_custom_call.1} parent=11 // pred_fallthru
          _
      $region12: #{tpu_custom_call.1} parent=5 // pred_fallthru
        _
      %p130 = scmp.lt.s32.totalorder %s15, 2
      // Predicated region
      $region21: #{tpu_custom_call.1} parent=5 // pred_check
        %p131 = pneg %p130
      $region22: #{tpu_custom_call.1} parent=5 // pred_check_branch
        %133 = sbr.rel (%p131) target = $region24
      $region23: #{tpu_custom_call.1} parent=5 // pred_region
        // Predicated region
        $region25: #{tpu_custom_call.1} parent=23 // pred_check
          %p134 = pneg %p35
        $region26: #{tpu_custom_call.1} parent=23 // pred_check_branch
          %136 = sbr.rel (%p134) target = $region28
        $region27: #{tpu_custom_call.1} parent=23 // pred_region
          %s137 = sand.u32 %s25, 1
          %s138 = scalar_lea.sflag [#allocation4], %s137
          %s139 = sand.u32 %s25, 1
          %s140 = smul.addr %s139, 64
          %s141 = scalar_lea.vmem [#allocation3], %s140
          %s142 = smul.u32 4, %s15
          %s144 = ssub.s32 1024, 1024
          %145 = vsyncadd %s138, %s144
          %s146 = smul.addr %s142, 2
          %s147 = smul.addr %s146, 128
          %s148 = scalar_lea.hbm %s0, %s147
          %s149 = sshll.u32 %s141, 4
          %s150 = int_to_ptr.vmem [resolvable:$true] %s149
          %155 = dma.hbm_to_vmem [thread:$0]  %s148, 1024, %s150, %s138, 128, 128, 8
        $region28: #{tpu_custom_call.1} parent=23 // pred_fallthru
          _
      $region24: #{tpu_custom_call.1} parent=5 // pred_fallthru
        _
      %p156 = scmp.le.s32.totalorder 1, %s15
      %p157 = scmp.lt.s32.totalorder %s15, 3
      %p158 = pnand %p156, %p157
      %p159 = pneg %p158
      // Predicated region
      $region29: #{tpu_custom_call.1} parent=5 // pred_check
        _
      $region30: #{tpu_custom_call.1} parent=5 // pred_check_branch
        %161 = sbr.rel (%p158) target = $region32
      $region31: #{tpu_custom_call.1} parent=5 // pred_region
        %s162 = ssub.s32 %s15, 1
        %s163 = sand.u32 %s28, 1
        %s164 = scalar_lea.sflag [#allocation4], %s163
        %s165 = sand.u32 %s28, 1
        %s166 = smul.addr %s165, 64
        %s167 = scalar_lea.vmem [#allocation3], %s166
        // Predicated region
        $region33: #{tpu_custom_call.1} parent=31 // pred_check
          %p168 = pneg %p41
        $region34: #{tpu_custom_call.1} parent=31 // pred_check_branch
          %170 = sbr.rel (%p168) target = $region36
        $region35: #{tpu_custom_call.1} parent=31 // pred_region
          %171 = dma.done %s164, 1024
        $region36: #{tpu_custom_call.1} parent=31 // pred_fallthru
          _
        %s172 = sand.u32 %s28, 1
        %s173 = scalar_lea.sflag [#allocation4], %s172
        %s174 = sand.u32 %s28, 1
        %s175 = smul.addr %s174, 64
        %s176 = scalar_lea.vmem [#allocation3], %s175
        %p177 = pneg %p41
        %p178 = pneg %p38
        %p179 = pneg %p62
        %p180 = pneg %p59
        %p181 = pneg %p83
        %p182 = pneg %p80
        %p183 = pneg %p109
        %p184 = pneg %p106
        %s185 = sand.u32 %s96, 1
        %s186 = scalar_lea.sflag [#allocation5], %s185
        %s187 = sand.u32 %s96, 1
        %s188 = smul.addr %s187, 32
        %s189 = scalar_lea.vmem [#allocation6], %s188
        %s190 = smul.u32 4, %s20
        %s191 = smul.u32 4, %s20
        %v192 = vld [vmem:[%s167] sm:$0xff]
        %v193 = vld [vmem:[%s167 + $0x8] sm:$0xff]
        %v194 = vld [vmem:[%s167 + $0x10] sm:$0xff]
        %v195 = vld [vmem:[%s167 + $0x18] sm:$0xff]
        %v196 = vld [vmem:[%s167 + $0x20] sm:$0xff]
        %v197 = vld [vmem:[%s167 + $0x28] sm:$0xff]
        %v198 = vld [vmem:[%s167 + $0x30] sm:$0xff]
        %v199 = vld [vmem:[%s167 + $0x38] sm:$0xff]
        %v200 = vld [vmem:[%s2] sm:$0xff]
        %v201 = vld [vmem:[%s2 + $0x8] sm:$0xff]
        %vm202 = vcmask 130048
        %v204 = vsel %vm202, %v192, 0
        %v207 = vsel %vm202, %v193, 0
        %v210 = vsel %vm202, %v194, 0
        %v213 = vsel %vm202, %v195, 0
        %v216 = vsel %vm202, %v196, 0
        %v219 = vsel %vm202, %v197, 0
        %v222 = vsel %vm202, %v198, 0
        %v225 = vsel %vm202, %v199, 0
        %227 = vmatprep.subr.mxu0 0.0
        %228 = vmatpush1.msra.mxu0 %v200
        %229 = vmatprep.subr.mxu0 0.0
        %230 = vmatpush1.msra.mxu0 %v201
        %231 = vmatprep.subr.mxu0 0.0
        %232 = vmatpush1.msra.mxu0 0.0
        %233 = vmatprep.subr.mxu0 0.0
        %234 = vmatpush1.msra.mxu0 0.0
        %235 = vmatprep.subr.mxu0 0.0
        %236 = vmatpush1.msra.mxu0 0.0
        %237 = vmatprep.subr.mxu0 0.0
        %238 = vmatpush1.msra.mxu0 0.0
        %239 = vmatprep.subr.mxu0 0.0
        %240 = vmatpush1.msra.mxu0 0.0
        %241 = vmatprep.subr.mxu0 0.0
        %242 = vmatpush1.msra.mxu0 0.0
        %243 = vmatprep.subr.mxu0 0.0
        %244 = vmatpush1.msra.mxu0 0.0
        %245 = vmatprep.subr.mxu0 0.0
        %246 = vmatpush1.msra.mxu0 0.0
        %247 = vmatprep.subr.mxu0 0.0
        %248 = vmatpush1.msra.mxu0 0.0
        %249 = vmatprep.subr.mxu0 0.0
        %250 = vmatpush1.msra.mxu0 0.0
        %251 = vmatprep.subr.mxu0 0.0
        %252 = vmatpush1.msra.mxu0 0.0
        %253 = vmatprep.subr.mxu0 0.0
        %254 = vmatpush1.msra.mxu0 0.0
        %255 = vmatprep.subr.mxu0 0.0
        %256 = vmatpush1.msra.mxu0 0.0
        %257 = vmatprep.subr.mxu0 0.0
        %258 = vmatpush1.msra.mxu0 0.0
        %259 = vmatprep.subr.mxu0 0.0
        %260 = vmatpush1.msra.mxu0 0.0
        %261 = vmatprep.subr.mxu0 0.0
        %262 = vmatpush1.msra.mxu0 0.0
        %263 = vmatprep.subr.mxu0 0.0
        %264 = vmatpush1.msra.mxu0 0.0
        %265 = vmatprep.subr.mxu0 0.0
        %266 = vmatpush1.msra.mxu0 0.0
        %267 = vmatprep.subr.mxu0 0.0
        %268 = vmatpush1.msra.mxu0 0.0
        %269 = vmatprep.subr.mxu0 0.0
        %270 = vmatpush1.msra.mxu0 0.0
        %271 = vmatprep.subr.mxu0 0.0
        %272 = vmatpush1.msra.mxu0 0.0
        %273 = vmatprep.subr.mxu0 0.0
        %274 = vmatpush1.msra.mxu0 0.0
        %275 = vmatprep.subr.mxu0 0.0
        %276 = vmatpush1.msra.mxu0 0.0
        %277 = vmatprep.subr.mxu0 0.0
        %278 = vmatpush1.msra.mxu0 0.0
        %279 = vmatprep.subr.mxu0 0.0
        %280 = vmatpush1.msra.mxu0 0.0
        %281 = vmatprep.subr.mxu0 0.0
        %282 = vmatpush1.msra.mxu0 0.0
        %283 = vmatprep.subr.mxu0 0.0
        %284 = vmatpush1.msra.mxu0 0.0
        %285 = vmatprep.subr.mxu0 0.0
        %286 = vmatpush1.msra.mxu0 0.0
        %287 = vmatprep.subr.mxu0 0.0
        %288 = vmatpush1.msra.mxu0 0.0
        %289 = vmatprep.subr.mxu0 0.0
        %290 = vmatpush1.msra.mxu0 0.0
        %291 = vmatprep.mubr.f32.mxu0 0.0
        %292 = vmatmul.mubr.f32.gmra.mrb[0].mxu0 %v204
        %v293 = vpop.f32.mrb[0].mxu0
        %v294 = vadd.f32 0.0, %v293
        %v295 = vpop.f32.mrb[0].mxu0
        %296 = vmatprep.mubr.f32.mxu0 0.0
        %297 = vmatmul.mubr.f32.gmra.mrb[0].mxu0 %v207
        %v298 = vpop.f32.mrb[0].mxu0
        %v299 = vadd.f32 0.0, %v298
        %v300 = vpop.f32.mrb[0].mxu0
        %301 = vmatprep.mubr.f32.mxu0 0.0
        %302 = vmatmul.mubr.f32.gmra.mrb[0].mxu0 %v210
        %v303 = vpop.f32.mrb[0].mxu0
        %v304 = vadd.f32 0.0, %v303
        %v305 = vpop.f32.mrb[0].mxu0
        %306 = vmatprep.mubr.f32.mxu0 0.0
        %307 = vmatmul.mubr.f32.gmra.mrb[0].mxu0 %v213
        %v308 = vpop.f32.mrb[0].mxu0
        %v309 = vadd.f32 0.0, %v308
        %v310 = vpop.f32.mrb[0].mxu0
        %311 = vmatprep.mubr.f32.mxu0 0.0
        %312 = vmatmul.mubr.f32.gmra.mrb[0].mxu0 %v216
        %v313 = vpop.f32.mrb[0].mxu0
        %v314 = vadd.f32 0.0, %v313
        %v315 = vpop.f32.mrb[0].mxu0
        %316 = vmatprep.mubr.f32.mxu0 0.0
        %317 = vmatmul.mubr.f32.gmra.mrb[0].mxu0 %v219
        %v318 = vpop.f32.mrb[0].mxu0
        %v319 = vadd.f32 0.0, %v318
        %v320 = vpop.f32.mrb[0].mxu0
        %321 = vmatprep.mubr.f32.mxu0 0.0
        %322 = vmatmul.mubr.f32.gmra.mrb[0].mxu0 %v222
        %v323 = vpop.f32.mrb[0].mxu0
        %v324 = vadd.f32 0.0, %v323
        %v325 = vpop.f32.mrb[0].mxu0
        %326 = vmatprep.mubr.f32.mxu0 0.0
        %327 = vmatmul.mubr.f32.gmra.mrb[0].mxu0 %v225
        %v328 = vpop.f32.mrb[0].mxu0
        %v329 = vadd.f32 0.0, %v328
        %v330 = vpop.f32.mrb[0].mxu0
        %331 = vdwg.mxu0
        %vm332 = vcmask 64512
        %333 = vst.msk [vmem:[#allocation2] sm:$0xff] %vm332, %v294
        %334 = vst.msk [vmem:[#allocation2 + $0x8] sm:$0xff] %vm332, %v299
        %335 = vst.msk [vmem:[#allocation2 + $0x10] sm:$0xff] %vm332, %v304
        %336 = vst.msk [vmem:[#allocation2 + $0x18] sm:$0xff] %vm332, %v309
        %337 = vst.msk [vmem:[#allocation2 + $0x20] sm:$0xff] %vm332, %v314
        %338 = vst.msk [vmem:[#allocation2 + $0x28] sm:$0xff] %vm332, %v319
        %339 = vst.msk [vmem:[#allocation2 + $0x30] sm:$0xff] %vm332, %v324
        %340 = vst.msk [vmem:[#allocation2 + $0x38] sm:$0xff] %vm332, %v329
        %v341 = vld [vmem:[%s1] sm:$0xff]
        %v342 = vld [vmem:[#allocation2] sm:$0xff]
        %v343 = vld [vmem:[#allocation2 + $0x8] sm:$0xff]
        %v345 = vsel %vm202, %v341, 0
        %347 = vmatprep.subr.mxu0 0.0
        %348 = vmatpush1.msra.mxu0 %v342
        %349 = vmatprep.subr.mxu0 0.0
        %350 = vmatpush1.msra.mxu0 %v343
        %351 = vmatprep.subr.mxu0 0.0
        %352 = vmatpush1.msra.mxu0 0.0
        %353 = vmatprep.subr.mxu0 0.0
        %354 = vmatpush1.msra.mxu0 0.0
        %355 = vmatprep.subr.mxu0 0.0
        %356 = vmatpush1.msra.mxu0 0.0
        %357 = vmatprep.subr.mxu0 0.0
        %358 = vmatpush1.msra.mxu0 0.0
        %359 = vmatprep.subr.mxu0 0.0
        %360 = vmatpush1.msra.mxu0 0.0
        %361 = vmatprep.subr.mxu0 0.0
        %362 = vmatpush1.msra.mxu0 0.0
        %363 = vmatprep.subr.mxu0 0.0
        %364 = vmatpush1.msra.mxu0 0.0
        %365 = vmatprep.subr.mxu0 0.0
        %366 = vmatpush1.msra.mxu0 0.0
        %367 = vmatprep.subr.mxu0 0.0
        %368 = vmatpush1.msra.mxu0 0.0
        %369 = vmatprep.subr.mxu0 0.0
        %370 = vmatpush1.msra.mxu0 0.0
        %371 = vmatprep.subr.mxu0 0.0
        %372 = vmatpush1.msra.mxu0 0.0
        %373 = vmatprep.subr.mxu0 0.0
        %374 = vmatpush1.msra.mxu0 0.0
        %375 = vmatprep.subr.mxu0 0.0
        %376 = vmatpush1.msra.mxu0 0.0
        %377 = vmatprep.subr.mxu0 0.0
        %378 = vmatpush1.msra.mxu0 0.0
        %379 = vmatprep.subr.mxu0 0.0
        %380 = vmatpush1.msra.mxu0 0.0
        %381 = vmatprep.subr.mxu0 0.0
        %382 = vmatpush1.msra.mxu0 0.0
        %383 = vmatprep.subr.mxu0 0.0
        %384 = vmatpush1.msra.mxu0 0.0
        %385 = vmatprep.subr.mxu0 0.0
        %386 = vmatpush1.msra.mxu0 0.0
        %387 = vmatprep.subr.mxu0 0.0
        %388 = vmatpush1.msra.mxu0 0.0
        %389 = vmatprep.subr.mxu0 0.0
        %390 = vmatpush1.msra.mxu0 0.0
        %391 = vmatprep.subr.mxu0 0.0
        %392 = vmatpush1.msra.mxu0 0.0
        %393 = vmatprep.subr.mxu0 0.0
        %394 = vmatpush1.msra.mxu0 0.0
        %395 = vmatprep.subr.mxu0 0.0
        %396 = vmatpush1.msra.mxu0 0.0
        %397 = vmatprep.subr.mxu0 0.0
        %398 = vmatpush1.msra.mxu0 0.0
        %399 = vmatprep.subr.mxu0 0.0
        %400 = vmatpush1.msra.mxu0 0.0
        %401 = vmatprep.subr.mxu0 0.0
        %402 = vmatpush1.msra.mxu0 0.0
        %403 = vmatprep.subr.mxu0 0.0
        %404 = vmatpush1.msra.mxu0 0.0
        %405 = vmatprep.subr.mxu0 0.0
        %406 = vmatpush1.msra.mxu0 0.0
        %407 = vmatprep.subr.mxu0 0.0
        %408 = vmatpush1.msra.mxu0 0.0
        %409 = vmatprep.subr.mxu0 0.0
        %410 = vmatpush1.msra.mxu0 0.0
        %411 = vmatprep.mubr.f32.mxu0 0.0
        %412 = vmatmul.mubr.f32.gmra.mrb[0].mxu0 %v345
        %v413 = vpop.f32.mrb[0].mxu0
        %v414 = vadd.f32 0.0, %v413
        %v415 = vpop.f32.mrb[0].mxu0
        %416 = vdwg.mxu0
        %417 = vst.msk [vmem:[%s189] sm:$0xff] %vm332, %v414
        %v418 = vld [vmem:[%s1] sm:$0xff]
        %s419 = scalar_lea.vmem [#allocation2], 16
        %v420 = vld [vmem:[%s419] sm:$0xff]
        %v421 = vld [vmem:[%s419 + $0x8] sm:$0xff]
        %v423 = vsel %vm202, %v418, 0
        %425 = vmatprep.subr.mxu0 0.0
        %426 = vmatpush1.msra.mxu0 %v420
        %427 = vmatprep.subr.mxu0 0.0
        %428 = vmatpush1.msra.mxu0 %v421
        %429 = vmatprep.subr.mxu0 0.0
        %430 = vmatpush1.msra.mxu0 0.0
        %431 = vmatprep.subr.mxu0 0.0
        %432 = vmatpush1.msra.mxu0 0.0
        %433 = vmatprep.subr.mxu0 0.0
        %434 = vmatpush1.msra.mxu0 0.0
        %435 = vmatprep.subr.mxu0 0.0
        %436 = vmatpush1.msra.mxu0 0.0
        %437 = vmatprep.subr.mxu0 0.0
        %438 = vmatpush1.msra.mxu0 0.0
        %439 = vmatprep.subr.mxu0 0.0
        %440 = vmatpush1.msra.mxu0 0.0
        %441 = vmatprep.subr.mxu0 0.0
        %442 = vmatpush1.msra.mxu0 0.0
        %443 = vmatprep.subr.mxu0 0.0
        %444 = vmatpush1.msra.mxu0 0.0
        %445 = vmatprep.subr.mxu0 0.0
        %446 = vmatpush1.msra.mxu0 0.0
        %447 = vmatprep.subr.mxu0 0.0
        %448 = vmatpush1.msra.mxu0 0.0
        %449 = vmatprep.subr.mxu0 0.0
        %450 = vmatpush1.msra.mxu0 0.0
        %451 = vmatprep.subr.mxu0 0.0
        %452 = vmatpush1.msra.mxu0 0.0
        %453 = vmatprep.subr.mxu0 0.0
        %454 = vmatpush1.msra.mxu0 0.0
        %455 = vmatprep.subr.mxu0 0.0
        %456 = vmatpush1.msra.mxu0 0.0
        %457 = vmatprep.subr.mxu0 0.0
        %458 = vmatpush1.msra.mxu0 0.0
        %459 = vmatprep.subr.mxu0 0.0
        %460 = vmatpush1.msra.mxu0 0.0
        %461 = vmatprep.subr.mxu0 0.0
        %462 = vmatpush1.msra.mxu0 0.0
        %463 = vmatprep.subr.mxu0 0.0
        %464 = vmatpush1.msra.mxu0 0.0
        %465 = vmatprep.subr.mxu0 0.0
        %466 = vmatpush1.msra.mxu0 0.0
        %467 = vmatprep.subr.mxu0 0.0
        %468 = vmatpush1.msra.mxu0 0.0
        %469 = vmatprep.subr.mxu0 0.0
        %470 = vmatpush1.msra.mxu0 0.0
        %471 = vmatprep.subr.mxu0 0.0
        %472 = vmatpush1.msra.mxu0 0.0
        %473 = vmatprep.subr.mxu0 0.0
        %474 = vmatpush1.msra.mxu0 0.0
        %475 = vmatprep.subr.mxu0 0.0
        %476 = vmatpush1.msra.mxu0 0.0
        %477 = vmatprep.subr.mxu0 0.0
        %478 = vmatpush1.msra.mxu0 0.0
        %479 = vmatprep.subr.mxu0 0.0
        %480 = vmatpush1.msra.mxu0 0.0
        %481 = vmatprep.subr.mxu0 0.0
        %482 = vmatpush1.msra.mxu0 0.0
        %483 = vmatprep.subr.mxu0 0.0
        %484 = vmatpush1.msra.mxu0 0.0
        %485 = vmatprep.subr.mxu0 0.0
        %486 = vmatpush1.msra.mxu0 0.0
        %487 = vmatprep.subr.mxu0 0.0
        %488 = vmatpush1.msra.mxu0 0.0
        %489 = vmatprep.mubr.f32.mxu0 0.0
        %490 = vmatmul.mubr.f32.gmra.mrb[0].mxu0 %v423
        %v491 = vpop.f32.mrb[0].mxu0
        %v492 = vadd.f32 0.0, %v491
        %v493 = vpop.f32.mrb[0].mxu0
        %494 = vdwg.mxu0
        %s495 = scalar_lea.vmem %s189, 8 [#allocation6]
        %496 = vst.msk [vmem:[%s495] sm:$0xff] %vm332, %v492
        %v497 = vld [vmem:[%s1] sm:$0xff]
        %s498 = scalar_lea.vmem [#allocation2], 32
        %v499 = vld [vmem:[%s498] sm:$0xff]
        %v500 = vld [vmem:[%s498 + $0x8] sm:$0xff]
        %v502 = vsel %vm202, %v497, 0
        %504 = vmatprep.subr.mxu0 0.0
        %505 = vmatpush1.msra.mxu0 %v499
        %506 = vmatprep.subr.mxu0 0.0
        %507 = vmatpush1.msra.mxu0 %v500
        %508 = vmatprep.subr.mxu0 0.0
        %509 = vmatpush1.msra.mxu0 0.0
        %510 = vmatprep.subr.mxu0 0.0
        %511 = vmatpush1.msra.mxu0 0.0
        %512 = vmatprep.subr.mxu0 0.0
        %513 = vmatpush1.msra.mxu0 0.0
        %514 = vmatprep.subr.mxu0 0.0
        %515 = vmatpush1.msra.mxu0 0.0
        %516 = vmatprep.subr.mxu0 0.0
        %517 = vmatpush1.msra.mxu0 0.0
        %518 = vmatprep.subr.mxu0 0.0
        %519 = vmatpush1.msra.mxu0 0.0
        %520 = vmatprep.subr.mxu0 0.0
        %521 = vmatpush1.msra.mxu0 0.0
        %522 = vmatprep.subr.mxu0 0.0
        %523 = vmatpush1.msra.mxu0 0.0
        %524 = vmatprep.subr.mxu0 0.0
        %525 = vmatpush1.msra.mxu0 0.0
        %526 = vmatprep.subr.mxu0 0.0
        %527 = vmatpush1.msra.mxu0 0.0
        %528 = vmatprep.subr.mxu0 0.0
        %529 = vmatpush1.msra.mxu0 0.0
        %530 = vmatprep.subr.mxu0 0.0
        %531 = vmatpush1.msra.mxu0 0.0
        %532 = vmatprep.subr.mxu0 0.0
        %533 = vmatpush1.msra.mxu0 0.0
        %534 = vmatprep.subr.mxu0 0.0
        %535 = vmatpush1.msra.mxu0 0.0
        %536 = vmatprep.subr.mxu0 0.0
        %537 = vmatpush1.msra.mxu0 0.0
        %538 = vmatprep.subr.mxu0 0.0
        %539 = vmatpush1.msra.mxu0 0.0
        %540 = vmatprep.subr.mxu0 0.0
        %541 = vmatpush1.msra.mxu0 0.0
        %542 = vmatprep.subr.mxu0 0.0
        %543 = vmatpush1.msra.mxu0 0.0
        %544 = vmatprep.subr.mxu0 0.0
        %545 = vmatpush1.msra.mxu0 0.0
        %546 = vmatprep.subr.mxu0 0.0
        %547 = vmatpush1.msra.mxu0 0.0
        %548 = vmatprep.subr.mxu0 0.0
        %549 = vmatpush1.msra.mxu0 0.0
        %550 = vmatprep.subr.mxu0 0.0
        %551 = vmatpush1.msra.mxu0 0.0
        %552 = vmatprep.subr.mxu0 0.0
        %553 = vmatpush1.msra.mxu0 0.0
        %554 = vmatprep.subr.mxu0 0.0
        %555 = vmatpush1.msra.mxu0 0.0
        %556 = vmatprep.subr.mxu0 0.0
        %557 = vmatpush1.msra.mxu0 0.0
        %558 = vmatprep.subr.mxu0 0.0
        %559 = vmatpush1.msra.mxu0 0.0
        %560 = vmatprep.subr.mxu0 0.0
        %561 = vmatpush1.msra.mxu0 0.0
        %562 = vmatprep.subr.mxu0 0.0
        %563 = vmatpush1.msra.mxu0 0.0
        %564 = vmatprep.subr.mxu0 0.0
        %565 = vmatpush1.msra.mxu0 0.0
        %566 = vmatprep.subr.mxu0 0.0
        %567 = vmatpush1.msra.mxu0 0.0
        %568 = vmatprep.mubr.f32.mxu0 0.0
        %569 = vmatmul.mubr.f32.gmra.mrb[0].mxu0 %v502
        %v570 = vpop.f32.mrb[0].mxu0
        %v571 = vadd.f32 0.0, %v570
        %v572 = vpop.f32.mrb[0].mxu0
        %573 = vdwg.mxu0
        %s574 = scalar_lea.vmem %s189, 16 [#allocation6]
        %575 = vst.msk [vmem:[%s574] sm:$0xff] %vm332, %v571
        %v576 = vld [vmem:[%s1] sm:$0xff]
        %s577 = scalar_lea.vmem [#allocation2], 48
        %v578 = vld [vmem:[%s577] sm:$0xff]
        %v579 = vld [vmem:[%s577 + $0x8] sm:$0xff]
        %v581 = vsel %vm202, %v576, 0
        %583 = vmatprep.subr.mxu0 0.0
        %584 = vmatpush1.msra.mxu0 %v578
        %585 = vmatprep.subr.mxu0 0.0
        %586 = vmatpush1.msra.mxu0 %v579
        %587 = vmatprep.subr.mxu0 0.0
        %588 = vmatpush1.msra.mxu0 0.0
        %589 = vmatprep.subr.mxu0 0.0
        %590 = vmatpush1.msra.mxu0 0.0
        %591 = vmatprep.subr.mxu0 0.0
        %592 = vmatpush1.msra.mxu0 0.0
        %593 = vmatprep.subr.mxu0 0.0
        %594 = vmatpush1.msra.mxu0 0.0
        %595 = vmatprep.subr.mxu0 0.0
        %596 = vmatpush1.msra.mxu0 0.0
        %597 = vmatprep.subr.mxu0 0.0
        %598 = vmatpush1.msra.mxu0 0.0
        %599 = vmatprep.subr.mxu0 0.0
        %600 = vmatpush1.msra.mxu0 0.0
        %601 = vmatprep.subr.mxu0 0.0
        %602 = vmatpush1.msra.mxu0 0.0
        %603 = vmatprep.subr.mxu0 0.0
        %604 = vmatpush1.msra.mxu0 0.0
        %605 = vmatprep.subr.mxu0 0.0
        %606 = vmatpush1.msra.mxu0 0.0
        %607 = vmatprep.subr.mxu0 0.0
        %608 = vmatpush1.msra.mxu0 0.0
        %609 = vmatprep.subr.mxu0 0.0
        %610 = vmatpush1.msra.mxu0 0.0
        %611 = vmatprep.subr.mxu0 0.0
        %612 = vmatpush1.msra.mxu0 0.0
        %613 = vmatprep.subr.mxu0 0.0
        %614 = vmatpush1.msra.mxu0 0.0
        %615 = vmatprep.subr.mxu0 0.0
        %616 = vmatpush1.msra.mxu0 0.0
        %617 = vmatprep.subr.mxu0 0.0
        %618 = vmatpush1.msra.mxu0 0.0
        %619 = vmatprep.subr.mxu0 0.0
        %620 = vmatpush1.msra.mxu0 0.0
        %621 = vmatprep.subr.mxu0 0.0
        %622 = vmatpush1.msra.mxu0 0.0
        %623 = vmatprep.subr.mxu0 0.0
        %624 = vmatpush1.msra.mxu0 0.0
        %625 = vmatprep.subr.mxu0 0.0
        %626 = vmatpush1.msra.mxu0 0.0
        %627 = vmatprep.subr.mxu0 0.0
        %628 = vmatpush1.msra.mxu0 0.0
        %629 = vmatprep.subr.mxu0 0.0
        %630 = vmatpush1.msra.mxu0 0.0
        %631 = vmatprep.subr.mxu0 0.0
        %632 = vmatpush1.msra.mxu0 0.0
        %633 = vmatprep.subr.mxu0 0.0
        %634 = vmatpush1.msra.mxu0 0.0
        %635 = vmatprep.subr.mxu0 0.0
        %636 = vmatpush1.msra.mxu0 0.0
        %637 = vmatprep.subr.mxu0 0.0
        %638 = vmatpush1.msra.mxu0 0.0
        %639 = vmatprep.subr.mxu0 0.0
        %640 = vmatpush1.msra.mxu0 0.0
        %641 = vmatprep.subr.mxu0 0.0
        %642 = vmatpush1.msra.mxu0 0.0
        %643 = vmatprep.subr.mxu0 0.0
        %644 = vmatpush1.msra.mxu0 0.0
        %645 = vmatprep.subr.mxu0 0.0
        %646 = vmatpush1.msra.mxu0 0.0
        %647 = vmatprep.mubr.f32.mxu0 0.0
        %648 = vmatmul.mubr.f32.gmra.mrb[0].mxu0 %v581
        %v649 = vpop.f32.mrb[0].mxu0
        %v650 = vadd.f32 0.0, %v649
        %v651 = vpop.f32.mrb[0].mxu0
        %652 = vdwg.mxu0
        %s653 = scalar_lea.vmem %s189, 24 [#allocation6]
        %654 = vst.msk [vmem:[%s653] sm:$0xff] %vm332, %v650
        %s655 = sand.u32 %s96, 1
        %s656 = scalar_lea.sflag [#allocation5], %s655
        %s657 = sand.u32 %s96, 1
        %s658 = smul.addr %s657, 32
        %s659 = scalar_lea.vmem [#allocation6], %s658
        // Predicated region
        $region37: #{tpu_custom_call.1} parent=31 // pred_check
          %p660 = pneg %p106
        $region38: #{tpu_custom_call.1} parent=31 // pred_check_branch
          %662 = sbr.rel (%p660) target = $region40
        $region39: #{tpu_custom_call.1} parent=31 // pred_region
          %s663 = smul.u32 4, %s20
          %s665 = ssub.s32 512, 512
          %666 = vsyncadd %s656, %s665
          %s667 = smul.addr %s663, 128
          %s668 = scalar_lea.hbm %s3, %s667
          %s669 = sshll.u32 %s659, 4
          %s670 = int_to_ptr.vmem [resolvable:$true] %s669
          %675 = dma.vmem_to_hbm [thread:$0]  %s670, 512, %s668, %s656, 128, 128, 8
        $region40: #{tpu_custom_call.1} parent=31 // pred_fallthru
          _
      $region32: #{tpu_custom_call.1} parent=5 // pred_fallthru
        _
      %p676 = scmp.le.s32.totalorder 2, %s15
      // Predicated region
      $region41: #{tpu_custom_call.1} parent=5 // pred_check
        %p677 = pneg %p676
      $region42: #{tpu_custom_call.1} parent=5 // pred_check_branch
        %679 = sbr.rel (%p677) target = $region44
      $region43: #{tpu_custom_call.1} parent=5 // pred_region
        %s680 = ssub.s32 %s15, 2
        // Predicated region
        $region45: #{tpu_custom_call.1} parent=43 // pred_check
          %p681 = pneg %p112
        $region46: #{tpu_custom_call.1} parent=43 // pred_check_branch
          %683 = sbr.rel (%p681) target = $region48
        $region47: #{tpu_custom_call.1} parent=43 // pred_region
          %s684 = sand.u32 %s97, 1
          %s685 = scalar_lea.sflag [#allocation5], %s684
          %s686 = sand.u32 %s97, 1
          %s687 = smul.addr %s686, 32
          %s688 = scalar_lea.vmem [#allocation6], %s687
          %689 = dma.done %s685, 512
        $region48: #{tpu_custom_call.1} parent=43 // pred_fallthru
          _
      $region44: #{tpu_custom_call.1} parent=5 // pred_fallthru
        _
    $region6: #{tpu_custom_call.1} parent=1 // loop_footer
      %s19 = sadd.s32 1, %s15
    $region7: #{tpu_custom_call.1} parent=1 // loop_footer_branch
      %14 = sbr.rel target = $region3
    $region8: #{tpu_custom_call.1} parent=1 // loop_exit
      _
    %690 = vsyncpa [#allocation4], 1
    %s691 = scalar_lea.sflag [#allocation4], 1
    %692 = vsyncpa %s691, 1
    %693 = vsyncpa [#allocation5], 1
    %s694 = scalar_lea.sflag [#allocation5], 1
    %695 = vsyncpa %s694, 1

</llo_original>
